<compile_context>
chip_gen: v7x
topology: tpu7x:2x2x1
jax: 0.10.0
libtpu: 0.0.40
codegen_flags: <defaults>
</compile_context>

<pallas_src>
import jax
import jax.numpy as jnp
from jax.experimental import pallas as pl
from jax.experimental.pallas import tpu as pltpu

_LANES = 128        # vreg lane width; slab columns stay a multiple of this
_TILE_ROWS = 64     # 64 x 4096 x 4 B = 1 MiB per buffer -> ~4 MiB resident with
_TILE_COLS = 4096   # double buffering (in + out); near HBM-roofline tile size


def _round_up(n, m):
    return ((n + m - 1) // m) * m


def _copy_kernel(x0_ref, o_ref):
    # Lane-dense tile copy: full-width unmasked vector loads/stores.
    # Purely DMA-bound (no MXU/VPU/XLU work exists in this op).
    o_ref[...] = x0_ref[...]


@jax.jit
def silverbox_h(x, u):
    """JAX wrapper reproducing Silverbox_h.forward(x, u) == x[:, 0]."""
    del u  # unused by the reference module; deliberately NOT fed to the kernel
    B = x.shape[0]

    # XLA-side strided slice of the first state component (reads only column 0,
    # cuts kernel HBM read traffic by a factor of nx).
    x0 = x[:, 0]                                            # [B]

    # Lane-dense slab geometry (pad B up to a whole number of tiles).
    cols = min(_TILE_COLS, _round_up(B, _LANES))
    rows_needed = pl.cdiv(B, cols)
    tile_rows = min(_TILE_ROWS, rows_needed)
    rows = _round_up(rows_needed, tile_rows)
    padded = rows * cols
    if padded != B:
        x0 = jnp.pad(x0, (0, padded - B))
    slab = x0.reshape(rows, cols)                           # free row-major reshape

    out = pl.pallas_call(
        _copy_kernel,
        out_shape=jax.ShapeDtypeStruct((rows, cols), x.dtype),
        grid=(rows // tile_rows,),
        in_specs=[pl.BlockSpec((tile_rows, cols), lambda i: (i, 0))],
        out_specs=pl.BlockSpec((tile_rows, cols), lambda i: (i, 0)),
        compiler_params=pltpu.CompilerParams(
            dimension_semantics=("parallel",),              # megacore-shardable on v7x
        ),
    )(slab)

    # Undo the layout plumbing: flatten and drop padding -> [B], == torch x[:, 0].
    return out.reshape(padded)[:B]


if __name__ == "__main__":
    key = jax.random.PRNGKey(0)
    kx, ku = jax.random.split(key)

    # Silverbox benchmark: nx = 2 states, nu = 1 input; small batch.
    B, nx, nu = 2, 2, 1
    x = jax.random.normal(kx, (B, nx), dtype=jnp.float32)
    u = jax.random.normal(ku, (B, nu), dtype=jnp.float32)

    y = jax.block_until_ready(silverbox_h(x, u))
    assert y.shape == (B,), y.shape
    assert jnp.allclose(y, x[:, 0]), (y, x[:, 0])

    # Also exercise the multi-tile (gridded) path with a ragged batch.
    B2 = 40000
    x2 = jax.random.normal(kx, (B2, nx), dtype=jnp.float32)
    u2 = jax.random.normal(ku, (B2, nu), dtype=jnp.float32)
    y2 = jax.block_until_ready(silverbox_h(x2, u2))
    assert y2.shape == (B2,), y2.shape
    assert jnp.allclose(y2, x2[:, 0])

    print("KERNEL_OK")
</pallas_src>

<mosaic_0001>
module attributes {stable_mosaic.version = 11 : i64} {
  func.func @_copy_kernel(%arg0: i32, %arg1: memref<1x128xf32, #tpu.memory_space<vmem>>, %arg2: memref<1x128xf32, #tpu.memory_space<vmem>>) attributes {dimension_semantics = [#tpu.dimension_semantics<parallel>], iteration_bounds = array<i64: 1>, scalar_prefetch = 0 : i64, scratch_operands = 0 : i64, tpu.core_type = #tpu.core_type<tc>, window_params = [{transform_indices = @transform_0, window_bounds = array<i64: 1, 128>}, {transform_indices = @transform_1, window_bounds = array<i64: 1, 128>}]} {
    %c0 = arith.constant 0 : index
    %c0_0 = arith.constant 0 : index
    %0 = vector.load %arg1[%c0, %c0_0] : memref<1x128xf32, #tpu.memory_space<vmem>>, vector<1x128xf32>
    %c0_1 = arith.constant 0 : index
    %c0_2 = arith.constant 0 : index
    %1 = vector.load %arg2[%c0_1, %c0_2] : memref<1x128xf32, #tpu.memory_space<vmem>>, vector<1x128xf32>
    tpu.vector_store %arg2[%c0_1, %c0_2], %0 {strides = array<i32>} : memref<1x128xf32, #tpu.memory_space<vmem>>, vector<1x128xf32>,
    return
  }
  func.func @transform_0(%arg0: i32) -> (i32, i32) {
    %c0_i32 = arith.constant 0 : i32
    %c0_i32_0 = arith.constant 0 : i32
    return %arg0, %c0_i32 : i32, i32
  }
  func.func @transform_1(%arg0: i32) -> (i32, i32) {
    %c0_i32 = arith.constant 0 : i32
    %c0_i32_0 = arith.constant 0 : i32
    return %arg0, %c0_i32 : i32, i32
  }
}

</mosaic_0001>

<llo_original>
// kernel: silverbox_h.1
$region0: #{silverbox_h.1}
  #allocation0 [shape = 'u32[]', space=smem, size = 0x4, offset = 0x4, fixed_abs, tag = 'smem constant byte address 0x4 - core index']
  #allocation1 [shape = 'u32[144,128]{1,0:T(1,128)}', space=vmem, size = 0x12000, scoped, tag = 'internal scratch']
  %s0 = inlined_call_operand.vmem [shape: f32[1,128], index: 0, kind: input, shape index: {}]
  %s1 = inlined_call_operand.vmem [shape: f32[1,128], index: 1, kind: output, shape index: {}]
  %s2 = sld [smem:[#allocation0]]
  $region14: #{silverbox_h.1} parent=0
    _
  %s4 = ssub.s32 1, %s2
  %s5 = scalar_select 0, %s4, %s2
  // Predicated region
  $region2: #{silverbox_h.1} parent=0 // pred_check
    _
  $region3: #{silverbox_h.1} parent=0 // pred_check_branch
    %7 = sbr.rel (0) target = $region5
  $region4: #{silverbox_h.1} parent=0 // pred_region
    _
  $region5: #{silverbox_h.1} parent=0 // pred_fallthru
    _
  %v8 = vld [vmem:[%s0] sm:$0x1]
  %9 = vst [vmem:[%s1] sm:$0x1] %v8
  // Predicated region
  $region6: #{silverbox_h.1} parent=0 // pred_check
    _
  $region7: #{silverbox_h.1} parent=0 // pred_check_branch
    %11 = sbr.rel (0) target = $region9
  $region8: #{silverbox_h.1} parent=0 // pred_region
    _
  $region9: #{silverbox_h.1} parent=0 // pred_fallthru
    _
  // Predicated region
  $region10: #{silverbox_h.1} parent=0 // pred_check
    _
  $region11: #{silverbox_h.1} parent=0 // pred_check_branch
    %13 = sbr.rel (0) target = $region13
  $region12: #{silverbox_h.1} parent=0 // pred_region
    _
  $region13: #{silverbox_h.1} parent=0 // pred_fallthru
    _

</llo_original>
